<compile_context>
chip_gen: v7x
topology: tpu7x:2x2x1
jax: 0.10.0
libtpu: 0.0.40
codegen_flags: <defaults>
</compile_context>

<pallas_src>
import functools

import jax
import jax.numpy as jnp
from jax.experimental import pallas as pl
from jax.experimental.pallas import tpu as pltpu


def _round_up(x, m):
    return ((x + m - 1) // m) * m


def _sublane_multiple(dtype):
    # 8 for f32, 16 for bf16, 32 for int8/fp8 (sub-32-bit packs along sublanes).
    itemsize = jnp.dtype(dtype).itemsize
    return max(8, 32 // itemsize)


def _device_config():
    """Per-generation tile defaults + VMEM limit + megacore flag."""
    try:
        kind = jax.devices()[0].device_kind.lower()
    except Exception:  # pragma: no cover - defensive fallback
        kind = ""
    if "v7" in kind:
        # v7x: ridge ~310 f/B, only 64 MiB physical VMEM, 2 TCs/chip.
        return dict(tm=768, tn=768, tk=2048, vmem=48 * 1024 * 1024, megacore=True)
    if "v6" in kind:
        # v6e: worst BW:compute ratio -> biggest tiles; 128 MiB physical VMEM.
        return dict(tm=1024, tn=1024, tk=2048, vmem=80 * 1024 * 1024, megacore=False)
    if "v5" in kind:
        # v5e: 512x512 already compute-bound; raise scoped VMEM past 16 MiB default.
        return dict(tm=512, tn=512, tk=1024, vmem=64 * 1024 * 1024, megacore=False)
    # Unknown backend: moderate, safe tiles.
    return dict(tm=512, tn=512, tk=1024, vmem=64 * 1024 * 1024, megacore=False)


def _linear_kernel(x_ref, w_ref, b_ref, o_ref, acc_ref):
    # x_ref: (tm, tk), w_ref: (tk, tn), b_ref: (1, tn),
    # o_ref: (tm, tn), acc_ref: (tm, tn) f32 scratch (persists over k axis).
    k = pl.program_id(2)

    @pl.when(k == 0)
    def _():
        acc_ref[...] = jnp.zeros_like(acc_ref)

    acc_ref[...] += jnp.dot(
        x_ref[...], w_ref[...], preferred_element_type=jnp.float32
    )

    @pl.when(k == pl.num_programs(2) - 1)
    def _():
        o_ref[...] = (
            acc_ref[...] + b_ref[...].astype(jnp.float32)
        ).astype(o_ref.dtype)


def _linear_kernel_single_k(x_ref, w_ref, b_ref, o_ref):
    # K fits in one tile: no accumulator scratch / RMW needed.
    o_ref[...] = (
        jnp.dot(x_ref[...], w_ref[...], preferred_element_type=jnp.float32)
        + b_ref[...].astype(jnp.float32)
    ).astype(o_ref.dtype)


@functools.partial(
    jax.jit,
    static_argnames=("tm", "tn", "tk", "compute_dtype", "vmem_limit", "megacore"),
)
def _linear_pallas(x, weight, bias, *, tm, tn, tk, compute_dtype, vmem_limit,
                   megacore):
    B, S, K = x.shape
    N = weight.shape[1]
    M = B * S
    out_dtype = x.dtype

    if compute_dtype is not None:
        x = x.astype(compute_dtype)
        weight = weight.astype(compute_dtype)
    cdt = x.dtype
    sub = _sublane_multiple(cdt)

    # Clamp tiles to the rounded-up problem size (dtype-aware sublane multiple).
    tm_e = min(tm, _round_up(M, sub))
    tk_e = min(tk, _round_up(K, 128))
    tn_e = min(tn, _round_up(N, 128))

    # v7x megacore: keep >= 2 parallel blocks so both TensorCores get work.
    if megacore and pl.cdiv(M, tm_e) * pl.cdiv(N, tn_e) < 2:
        half = _round_up(pl.cdiv(tm_e, 2), sub)
        if half < tm_e and pl.cdiv(M, half) >= 2:
            tm_e = half

    # Only K strictly needs zero padding (it feeds the accumulation).
    # M / N use cdiv-style partial boundary blocks: garbage reads there only
    # land in output rows/cols that are dropped by masked stores / sliced away.
    K_p = _round_up(K, tk_e)
    N_p = _round_up(N, tn_e)

    x2d = x.reshape(M, K)
    if K_p != K:
        x2d = jnp.pad(x2d, ((0, 0), (0, K_p - K)))
    w2d = weight
    if (K_p, N_p) != (K, N):
        w2d = jnp.pad(w2d, ((0, K_p - K), (0, N_p - N)))
    b2d = bias.reshape(1, N)
    if N_p != N:
        b2d = jnp.pad(b2d, ((0, 0), (0, N_p - N)))

    grid = (pl.cdiv(M, tm_e), N_p // tn_e, K_p // tk_e)
    single_k = grid[2] == 1

    kernel = _linear_kernel_single_k if single_k else _linear_kernel
    scratch = [] if single_k else [pltpu.VMEM((tm_e, tn_e), jnp.float32)]

    cost = pl.CostEstimate(
        flops=2 * M * N * K,
        transcendentals=0,
        bytes_accessed=(M * K + K * N) * jnp.dtype(cdt).itemsize
        + M * N * jnp.dtype(out_dtype).itemsize
        + N * jnp.dtype(bias.dtype).itemsize,
    )

    out = pl.pallas_call(
        kernel,
        out_shape=jax.ShapeDtypeStruct((M, N_p), out_dtype),
        grid_spec=pltpu.PrefetchScalarGridSpec(
            num_scalar_prefetch=0,
            grid=grid,
            in_specs=[
                pl.BlockSpec((tm_e, tk_e), lambda i, j, k: (i, k)),
                pl.BlockSpec((tk_e, tn_e), lambda i, j, k: (k, j)),
                pl.BlockSpec((1, tn_e), lambda i, j, k: (0, j)),
            ],
            out_specs=pl.BlockSpec((tm_e, tn_e), lambda i, j, k: (i, j)),
            scratch_shapes=scratch,
        ),
        compiler_params=pltpu.CompilerParams(
            dimension_semantics=("parallel", "parallel", "arbitrary"),
            vmem_limit_bytes=vmem_limit,
        ),
        cost_estimate=cost,
    )(x2d, w2d, b2d)

    return out[:, :N].reshape(B, S, N)


def common_norm_forward(x, weight, bias, *, compute_dtype=jnp.bfloat16,
                        tm=None, tn=None, tk=None):
    """CommonNorm forward: y = x @ W + b.

    x:      (B, S, in_features)
    weight: (in_features, out_features)   (== torch W^T)
    bias:   (out_features,)
    """
    cfg = _device_config()
    return _linear_pallas(
        x, weight, bias,
        tm=tm if tm is not None else cfg["tm"],
        tn=tn if tn is not None else cfg["tn"],
        tk=tk if tk is not None else cfg["tk"],
        compute_dtype=compute_dtype,
        vmem_limit=cfg["vmem"],
        megacore=cfg["megacore"],
    )


def xavier_uniform(key, fan_in, fan_out, gain=1.0, dtype=jnp.float32):
    # matches torch.nn.init.xavier_uniform_ semantics
    bound = gain * (6.0 / (fan_in + fan_out)) ** 0.5
    return jax.random.uniform(
        key, (fan_in, fan_out), minval=-bound, maxval=bound, dtype=dtype
    )


if __name__ == "__main__":
    key = jax.random.PRNGKey(0)
    k_x, k_w, k_b = jax.random.split(key, 3)

    B, S, IN, OUT = 2, 8, 32, 32
    x = jax.random.normal(k_x, (B, S, IN), dtype=jnp.float32)

    # gain = calculate_gain('linear') = 1.0
    weight = xavier_uniform(k_w, IN, OUT, gain=1.0)        # (in, out) == torch W^T
    bias = jax.random.uniform(k_b, (OUT,), minval=-0.1, maxval=0.1)

    y = common_norm_forward(x, weight, bias)
    y = jax.block_until_ready(y)
    assert y.shape == (B, S, OUT)

    # Reference applies the same bf16 rounding to x/W, then f32 accumulation.
    x_ref = x.astype(jnp.bfloat16).astype(jnp.float32).reshape(-1, IN)
    w_ref = weight.astype(jnp.bfloat16).astype(jnp.float32)
    y_ref = jnp.dot(x_ref, w_ref, precision=jax.lax.Precision.HIGHEST) + bias

    assert jnp.allclose(y.reshape(-1, OUT), y_ref, atol=1e-3, rtol=1e-3)

    print("KERNEL_OK")
</pallas_src>

<mosaic_0001>
module attributes {stable_mosaic.version = 11 : i64} {
  func.func @_linear_kernel_single_k(%arg0: i32, %arg1: i32, %arg2: i32, %arg3: memref<16x128xbf16, #tpu.memory_space<vmem>>, %arg4: memref<128x128xbf16, #tpu.memory_space<vmem>>, %arg5: memref<1x128xf32, #tpu.memory_space<vmem>>, %arg6: memref<16x128xf32, #tpu.memory_space<vmem>>) attributes {dimension_semantics = [#tpu.dimension_semantics<parallel>, #tpu.dimension_semantics<parallel>, #tpu.dimension_semantics<arbitrary>], iteration_bounds = array<i64: 1, 1, 1>, scalar_prefetch = 0 : i64, scratch_operands = 0 : i64, tpu.core_type = #tpu.core_type<tc>, window_params = [{transform_indices = @transform_0, window_bounds = array<i64: 16, 128>}, {transform_indices = @transform_1, window_bounds = array<i64: 128, 128>}, {transform_indices = @transform_2, window_bounds = array<i64: 1, 128>}, {transform_indices = @transform_3, window_bounds = array<i64: 16, 128>}]} {
    %c0 = arith.constant 0 : index
    %c0_0 = arith.constant 0 : index
    %0 = vector.load %arg3[%c0, %c0_0] : memref<16x128xbf16, #tpu.memory_space<vmem>>, vector<16x128xbf16>
    %c0_1 = arith.constant 0 : index
    %c0_2 = arith.constant 0 : index
    %1 = vector.load %arg4[%c0_1, %c0_2] : memref<128x128xbf16, #tpu.memory_space<vmem>>, vector<128x128xbf16>
    %cst = arith.constant dense<0.000000e+00> : vector<16x128xf32>
    %2 = tpu.matmul %0, %1, %cst {dimension_numbers = #tpu.dot_dimension_numbers<[1], [0], [0], [1], [0, 0, 1, 1], [], []>} : vector<16x128xbf16>, vector<128x128xbf16>, vector<16x128xf32> -> vector<16x128xf32>
    %c0_3 = arith.constant 0 : index
    %c0_4 = arith.constant 0 : index
    %3 = vector.load %arg5[%c0_3, %c0_4] : memref<1x128xf32, #tpu.memory_space<vmem>>, vector<1x128xf32>
    %4 = vector.broadcast %3 : vector<1x128xf32> to vector<16x128xf32>
    %5 = arith.addf %2, %4 : vector<16x128xf32>
    %c0_5 = arith.constant 0 : index
    %c0_6 = arith.constant 0 : index
    %6 = vector.load %arg6[%c0_5, %c0_6] : memref<16x128xf32, #tpu.memory_space<vmem>>, vector<16x128xf32>
    tpu.vector_store %arg6[%c0_5, %c0_6], %5 {strides = array<i32>} : memref<16x128xf32, #tpu.memory_space<vmem>>, vector<16x128xf32>,
    return
  }
  func.func @transform_0(%arg0: i32, %arg1: i32, %arg2: i32) -> (i32, i32) {
    %c0_i32 = arith.constant 0 : i32
    return %arg0, %arg2 : i32, i32
  }
  func.func @transform_1(%arg0: i32, %arg1: i32, %arg2: i32) -> (i32, i32) {
    %c0_i32 = arith.constant 0 : i32
    return %arg2, %arg1 : i32, i32
  }
  func.func @transform_2(%arg0: i32, %arg1: i32, %arg2: i32) -> (i32, i32) {
    %c0_i32 = arith.constant 0 : i32
    %c0_i32_0 = arith.constant 0 : i32
    return %c0_i32, %arg1 : i32, i32
  }
  func.func @transform_3(%arg0: i32, %arg1: i32, %arg2: i32) -> (i32, i32) {
    %c0_i32 = arith.constant 0 : i32
    return %arg0, %arg1 : i32, i32
  }
}

</mosaic_0001>

<llo_original>
// kernel: _linear_pallas.1
$region0: #{_linear_pallas.1}
  #allocation0 [shape = 'u32[]', space=smem, size = 0x4, offset = 0x4, fixed_abs, tag = 'smem constant byte address 0x4 - core index']
  #allocation1 [shape = 'u32[144,128]{1,0:T(1,128)}', space=vmem, size = 0x12000, scoped, tag = 'internal scratch']
  %s0 = inlined_call_operand.hbm [shape: bf16[16,128], index: 0, kind: input, shape index: {}]
  %s1 = inlined_call_operand.hbm [shape: bf16[128,128], index: 1, kind: input, shape index: {}]
  %s2 = inlined_call_operand.hbm [shape: f32[1,128], index: 2, kind: input, shape index: {}]
  %s3 = inlined_call_operand.hbm [shape: f32[16,128], index: 3, kind: output, shape index: {}]
  %s4 = sld [smem:[#allocation0]]
  $region34: #{_linear_pallas.1} parent=0
    _
  %s6 = ssub.s32 1, %s4
  %s7 = scalar_select 0, %s6, %s4
  $region1: #{_linear_pallas.1} parent=0
    #allocation2 [shape = 'u8[4096]{0}', space=vmem, size = 0x1000, scoped, tag = 'input window, operand 0, single buffered']
    #allocation3 [shape = 's32[1]{0}', space=sflag, size = 0x4, scoped, tag = 'scoped memory for _linear_pallas.1']
    #allocation4 [shape = 's32[1]{0}', space=sflag, size = 0x4, scoped, tag = 'scoped memory for _linear_pallas.1']
    #allocation5 [shape = 'u8[32768]{0}', space=vmem, size = 0x8000, scoped, tag = 'input window, operand 1, single buffered']
    #allocation6 [shape = 's32[1]{0}', space=sflag, size = 0x4, scoped, tag = 'scoped memory for _linear_pallas.1']
    #allocation7 [shape = 'u8[512]{0}', space=vmem, size = 0x400, scoped, tag = 'input window, operand 2, single buffered']
    #allocation8 [shape = 'u8[8192]{0}', space=vmem, size = 0x2000, scoped, tag = 'output window, operand 0, single buffered']
    %8 = vsyncpa [#allocation3], 0
    %9 = vsyncpa [#allocation6], 0
    %10 = vsyncpa [#allocation4], 0
    // Predicated region
    $region2: #{_linear_pallas.1} parent=1 // pred_check
      _
    $region3: #{_linear_pallas.1} parent=1 // pred_check_branch
      %12 = sbr.rel (0) target = $region5
    $region4: #{_linear_pallas.1} parent=1 // pred_region
      %s14 = ssub.s32 128, 128
      %15 = vsyncadd [#allocation3], %s14
      %s16 = sshll.u32 [#allocation2], 4
      %s17 = int_to_ptr.vmem [resolvable:$true] %s16
      %22 = dma.hbm_to_vmem [thread:$0]  %s0, 128, %s17, [#allocation3], 64, 64, 4
    $region5: #{_linear_pallas.1} parent=1 // pred_fallthru
      _
    // Predicated region
    $region6: #{_linear_pallas.1} parent=1 // pred_check
      _
    $region7: #{_linear_pallas.1} parent=1 // pred_check_branch
      %24 = sbr.rel (0) target = $region9
    $region8: #{_linear_pallas.1} parent=1 // pred_region
      %s26 = ssub.s32 1024, 1024
      %27 = vsyncadd [#allocation6], %s26
      %s28 = sshll.u32 [#allocation5], 4
      %s29 = int_to_ptr.vmem [resolvable:$true] %s28
      %34 = dma.hbm_to_vmem [thread:$0]  %s1, 1024, %s29, [#allocation6], 64, 64, 4
    $region9: #{_linear_pallas.1} parent=1 // pred_fallthru
      _
    // Predicated region
    $region10: #{_linear_pallas.1} parent=1 // pred_check
      _
    $region11: #{_linear_pallas.1} parent=1 // pred_check_branch
      %36 = sbr.rel (0) target = $region13
    $region12: #{_linear_pallas.1} parent=1 // pred_region
      %s38 = ssub.s32 16, 16
      %39 = vsyncadd [#allocation6], %s38
      %s41 = sshll.u32 [#allocation7], 4
      %s42 = int_to_ptr.vmem [resolvable:$true] %s41
      %44 = dma.hbm_to_vmem [thread:$0]  %s2, 16, %s42, [#allocation6]
    $region13: #{_linear_pallas.1} parent=1 // pred_fallthru
      _
    // Predicated region
    $region14: #{_linear_pallas.1} parent=1 // pred_check
      _
    $region15: #{_linear_pallas.1} parent=1 // pred_check_branch
      %46 = sbr.rel (0) target = $region17
    $region16: #{_linear_pallas.1} parent=1 // pred_region
      %47 = dma.done [#allocation3], 128
    $region17: #{_linear_pallas.1} parent=1 // pred_fallthru
      _
    // Predicated region
    $region18: #{_linear_pallas.1} parent=1 // pred_check
      _
    $region19: #{_linear_pallas.1} parent=1 // pred_check_branch
      %49 = sbr.rel (0) target = $region21
    $region20: #{_linear_pallas.1} parent=1 // pred_region
      %50 = dma.done [#allocation6], 1024
    $region21: #{_linear_pallas.1} parent=1 // pred_fallthru
      _
    // Predicated region
    $region22: #{_linear_pallas.1} parent=1 // pred_check
      _
    $region23: #{_linear_pallas.1} parent=1 // pred_check_branch
      %52 = sbr.rel (0) target = $region25
    $region24: #{_linear_pallas.1} parent=1 // pred_region
      %53 = dma.done [#allocation6], 16
    $region25: #{_linear_pallas.1} parent=1 // pred_fallthru
      _
    %v55 = vld [vmem:[#allocation2] sm:$0xf]
    %v56 = vld [vmem:[#allocation2 + $0x4] sm:$0xf]
    %v57 = vld [vmem:[#allocation5] sm:$0xf]
    %v58 = vld [vmem:[#allocation5 + $0x4] sm:$0xf]
    %v59 = vld [vmem:[#allocation5 + $0x8] sm:$0xf]
    %v60 = vld [vmem:[#allocation5 + $0xc] sm:$0xf]
    %v61 = vld [vmem:[#allocation5 + $0x10] sm:$0xf]
    %v62 = vld [vmem:[#allocation5 + $0x14] sm:$0xf]
    %v63 = vld [vmem:[#allocation5 + $0x18] sm:$0xf]
    %v64 = vld [vmem:[#allocation5 + $0x1c] sm:$0xf]
    %v65 = vld [vmem:[#allocation5 + $0x20] sm:$0xf]
    %v66 = vld [vmem:[#allocation5 + $0x24] sm:$0xf]
    %v67 = vld [vmem:[#allocation5 + $0x28] sm:$0xf]
    %v68 = vld [vmem:[#allocation5 + $0x2c] sm:$0xf]
    %v69 = vld [vmem:[#allocation5 + $0x30] sm:$0xf]
    %v70 = vld [vmem:[#allocation5 + $0x34] sm:$0xf]
    %v71 = vld [vmem:[#allocation5 + $0x38] sm:$0xf]
    %v72 = vld [vmem:[#allocation5 + $0x3c] sm:$0xf]
    %v73 = vld [vmem:[#allocation7] sm:$0x1]
    %v75 = vlaneseq
    %v76 = vshrl.u32 %v75, 7
    %v77 = vsub.s32 0, %v76
    %v78 = vrot.slane %v73, %v77
    %v82 = vunpack.c.l.b16 %v55
    %v83 = vunpack.c.l.b16 %v56
    %v84 = vpack.c.b16 %v83, %v82
    %v102 = vunpack.c.l.b16 %v57
    %v103 = vunpack.c.l.b16 %v58
    %v104 = vunpack.c.l.b16 %v59
    %v105 = vunpack.c.l.b16 %v60
    %v106 = vunpack.c.l.b16 %v61
    %v107 = vunpack.c.l.b16 %v62
    %v108 = vunpack.c.l.b16 %v63
    %v109 = vunpack.c.l.b16 %v64
    %v110 = vunpack.c.l.b16 %v65
    %v111 = vunpack.c.l.b16 %v66
    %v112 = vunpack.c.l.b16 %v67
    %v113 = vunpack.c.l.b16 %v68
    %v114 = vunpack.c.l.b16 %v69
    %v115 = vunpack.c.l.b16 %v70
    %v116 = vunpack.c.l.b16 %v71
    %v117 = vunpack.c.l.b16 %v72
    %v118 = vpack.c.b16 %v103, %v102
    %v119 = vpack.c.b16 %v105, %v104
    %v120 = vpack.c.b16 %v107, %v106
    %v121 = vpack.c.b16 %v109, %v108
    %v122 = vpack.c.b16 %v111, %v110
    %v123 = vpack.c.b16 %v113, %v112
    %v124 = vpack.c.b16 %v115, %v114
    %v125 = vpack.c.b16 %v117, %v116
    %134 = vmatprep.subr.bf16.mxu0 0
    %135 = vmatpush1.bf16.msra.mxu0 %v118
    %136 = vmatprep.subr.bf16.mxu0 0
    %137 = vmatpush1.bf16.msra.mxu0 %v119
    %138 = vmatprep.subr.bf16.mxu0 0
    %139 = vmatpush1.bf16.msra.mxu0 %v120
    %140 = vmatprep.subr.bf16.mxu0 0
    %141 = vmatpush1.bf16.msra.mxu0 %v121
    %142 = vmatprep.subr.bf16.mxu0 0
    %143 = vmatpush1.bf16.msra.mxu0 %v122
    %144 = vmatprep.subr.bf16.mxu0 0
    %145 = vmatpush1.bf16.msra.mxu0 %v123
    %146 = vmatprep.subr.bf16.mxu0 0
    %147 = vmatpush1.bf16.msra.mxu0 %v124
    %148 = vmatprep.subr.bf16.mxu0 0
    %149 = vmatpush1.bf16.msra.mxu0 %v125
    %150 = vmatprep.subr.bf16.mxu0 0
    %151 = vmatpush1.bf16.msra.mxu0 0
    %152 = vmatprep.subr.bf16.mxu0 0
    %153 = vmatpush1.bf16.msra.mxu0 0
    %154 = vmatprep.subr.bf16.mxu0 0
    %155 = vmatpush1.bf16.msra.mxu0 0
    %156 = vmatprep.subr.bf16.mxu0 0
    %157 = vmatpush1.bf16.msra.mxu0 0
    %158 = vmatprep.subr.bf16.mxu0 0
    %159 = vmatpush1.bf16.msra.mxu0 0
    %160 = vmatprep.subr.bf16.mxu0 0
    %161 = vmatpush1.bf16.msra.mxu0 0
    %162 = vmatprep.subr.bf16.mxu0 0
    %163 = vmatpush1.bf16.msra.mxu0 0
    %164 = vmatprep.subr.bf16.mxu0 0
    %165 = vmatpush1.bf16.msra.mxu0 0
    %166 = vmatprep.mubr.bf16.mxu0 0
    %167 = vmatmul.mubr.bf16.gmra.mrb[0].mxu0 %v84
    %v168 = vpop.f32.mrb[0].mxu0
    %v169 = vadd.f32 %v78, %v168
    %v170 = vpop.f32.mrb[0].mxu0
    %v171 = vpop.f32.mrb[0].mxu0
    %v172 = vadd.f32 %v78, %v171
    %v173 = vpop.f32.mrb[0].mxu0
    %174 = vdwg.mxu0
    %175 = vst [vmem:[#allocation8] sm:$0xff] %v169
    %176 = vst [vmem:[#allocation8 + $0x8] sm:$0xff] %v172
    // Predicated region
    $region26: #{_linear_pallas.1} parent=1 // pred_check
      _
    $region27: #{_linear_pallas.1} parent=1 // pred_check_branch
      %178 = sbr.rel (0) target = $region29
    $region28: #{_linear_pallas.1} parent=1 // pred_region
      %s180 = ssub.s32 256, 256
      %181 = vsyncadd [#allocation4], %s180
      %s182 = sshll.u32 [#allocation8], 4
      %s183 = int_to_ptr.vmem [resolvable:$true] %s182
      %188 = dma.vmem_to_hbm [thread:$0]  %s183, 256, %s3, [#allocation4], 128, 128, 8
    $region29: #{_linear_pallas.1} parent=1 // pred_fallthru
      _
    // Predicated region
    $region30: #{_linear_pallas.1} parent=1 // pred_check
      _
    $region31: #{_linear_pallas.1} parent=1 // pred_check_branch
      %190 = sbr.rel (0) target = $region33
    $region32: #{_linear_pallas.1} parent=1 // pred_region
      %191 = dma.done [#allocation4], 256
    $region33: #{_linear_pallas.1} parent=1 // pred_fallthru
      _
    %192 = vsyncpa [#allocation3], 1
    %193 = vsyncpa [#allocation6], 1
    %194 = vsyncpa [#allocation4], 1

</llo_original>
